<compile_context>
chip_gen: v5e
topology: v5e:2x2
jax: 0.10.0
libtpu: 0.0.40
codegen_flags: <defaults>
</compile_context>

<pallas_src>
import jax
import jax.numpy as jnp
from jax.experimental import pallas as pl
from jax.experimental.pallas import tpu as pltpu

_LANE = 128
_SUBLANE = 8


def _evaluator_kernel(x_ref, w_ref, b_ref, o_ref):
    # x_ref: (TB, K)      bf16  flattened one-hot boards (one batch tile)
    # w_ref: (K, M_pad)   bf16  projection weights (resident across the grid)
    # b_ref: (1, M_pad)   f32   bias (resident across the grid)
    # o_ref: (TB, M_pad)  f32   metrics (lane-dense: M_pad % 128 == 0)
    acc = jnp.dot(x_ref[...], w_ref[...], preferred_element_type=jnp.float32)
    # f32 epilogue (bias add + store) — cheap VPU work hidden under the MXU.
    o_ref[...] = (acc + b_ref[...]).astype(o_ref.dtype)


def evaluator_forward(one_hot_board, weight, bias, *, batch_tile=512):
    """one_hot_board: (B, C, H, W); weight: (C*H*W, M); bias: (M,). -> (B, M) f32."""
    B = one_hot_board.shape[0]
    K, M = weight.shape

    # Lane-dense output width and sublane-aligned batch tiling.
    m_pad = max(_LANE, pl.cdiv(M, _LANE) * _LANE)
    tb = min(batch_tile, pl.cdiv(B, _SUBLANE) * _SUBLANE)
    tb = max(_SUBLANE, (tb // _SUBLANE) * _SUBLANE)
    b_pad = pl.cdiv(B, tb) * tb
    num_tiles = b_pad // tb

    # Pure reshape (input is already NCHW-contiguous); bf16 operands, f32 acc.
    x_flat = one_hot_board.reshape(B, K)
    if b_pad != B:
        x_flat = jnp.pad(x_flat, ((0, b_pad - B), (0, 0)))
    x_bf16 = x_flat.astype(jnp.bfloat16)

    w_bf16 = weight.astype(jnp.bfloat16)
    b_f32 = bias.astype(jnp.float32).reshape(1, M)
    if m_pad != M:
        w_bf16 = jnp.pad(w_bf16, ((0, 0), (0, m_pad - M)))
        b_f32 = jnp.pad(b_f32, ((0, 0), (0, m_pad - M)))

    # Explicit VMEM budget: double-buffered x/out tiles + resident weight/bias,
    # with 2x headroom (matters on v7x's 64 MiB physical VMEM).
    vmem_bytes = (
        2 * (tb * K * 2)          # x tile, double-buffered, bf16
        + (K * m_pad * 2)         # weight, bf16 (resident, single copy)
        + (1 * m_pad * 4)         # bias, f32 (resident)
        + 2 * (tb * m_pad * 4)    # out tile, double-buffered, f32
    )
    vmem_limit = int(min(max(2 * vmem_bytes, 4 << 20), 48 << 20))

    cost = pl.CostEstimate(
        flops=2 * b_pad * K * m_pad,
        transcendentals=0,
        bytes_accessed=(b_pad * K * 2) + (K * m_pad * 2) + (b_pad * m_pad * 4),
    )

    out = pl.pallas_call(
        _evaluator_kernel,
        out_shape=jax.ShapeDtypeStruct((b_pad, m_pad), jnp.float32),
        grid_spec=pltpu.PrefetchScalarGridSpec(
            num_scalar_prefetch=0,
            grid=(num_tiles,),
            in_specs=[
                pl.BlockSpec((tb, K), lambda i: (i, 0)),       # x: tiled over B
                pl.BlockSpec((K, m_pad), lambda i: (0, 0)),    # weight: resident
                pl.BlockSpec((1, m_pad), lambda i: (0, 0)),    # bias: resident
            ],
            out_specs=pl.BlockSpec((tb, m_pad), lambda i: (i, 0)),
        ),
        compiler_params=pltpu.CompilerParams(
            dimension_semantics=("parallel",),
            vmem_limit_bytes=vmem_limit,
        ),
        cost_estimate=cost,
    )(x_bf16, w_bf16, b_f32)

    return out[:B, :M]


if __name__ == "__main__":
    # Small, forward-implied shapes: board_shape=(8,8), 3 one-hot planes
    # (empty / player / opponent), batch=2, num_metrics=4.
    board_shape = (8, 8)
    num_planes = 3
    batch = 2
    num_metrics = 4
    K = num_planes * board_shape[0] * board_shape[1]

    key = jax.random.PRNGKey(0)
    k_board, k_w, k_b = jax.random.split(key, 3)

    # Build the one-hot board directly in NCHW order (no transpose copy).
    plane_idx = jax.random.randint(
        k_board, (batch, board_shape[0], board_shape[1]), 0, num_planes
    )
    one_hot_board = (
        plane_idx[:, None, :, :] == jnp.arange(num_planes)[None, :, None, None]
    ).astype(jnp.float32)

    # Deterministic synthetic parameters.
    weight = 0.01 * jax.random.normal(k_w, (K, num_metrics), dtype=jnp.float32)
    bias = 0.1 * jax.random.normal(k_b, (num_metrics,), dtype=jnp.float32)

    out = evaluator_forward(one_hot_board, weight, bias)
    out = jax.block_until_ready(out)

    # Sanity check against plain-JAX f32 reference (bf16 weight rounding only,
    # so tolerance is loosened accordingly).
    ref = one_hot_board.reshape(batch, K) @ weight + bias[None, :]
    assert out.shape == (batch, num_metrics)
    assert jnp.allclose(out, ref, atol=1e-2, rtol=1e-2), "mismatch vs reference"

    print("KERNEL_OK")
</pallas_src>

<mosaic_0001>
module attributes {stable_mosaic.version = 11 : i64} {
  func.func @_evaluator_kernel(%arg0: i32, %arg1: memref<8x192xbf16, #tpu.memory_space<vmem>>, %arg2: memref<192x128xbf16, #tpu.memory_space<vmem>>, %arg3: memref<1x128xf32, #tpu.memory_space<vmem>>, %arg4: memref<8x128xf32, #tpu.memory_space<vmem>>) attributes {dimension_semantics = [#tpu.dimension_semantics<parallel>], iteration_bounds = array<i64: 1>, scalar_prefetch = 0 : i64, scratch_operands = 0 : i64, tpu.core_type = #tpu.core_type<tc>, window_params = [{transform_indices = @transform_0, window_bounds = array<i64: 8, 192>}, {pipeline_mode = #tpu.pipeline_mode<synchronous>, transform_indices = @transform_1, window_bounds = array<i64: 192, 128>}, {pipeline_mode = #tpu.pipeline_mode<synchronous>, transform_indices = @transform_2, window_bounds = array<i64: 1, 128>}, {transform_indices = @transform_3, window_bounds = array<i64: 8, 128>}]} {
    %c0 = arith.constant 0 : index
    %c0_0 = arith.constant 0 : index
    %0 = vector.load %arg1[%c0, %c0_0] : memref<8x192xbf16, #tpu.memory_space<vmem>>, vector<8x192xbf16>
    %c0_1 = arith.constant 0 : index
    %c0_2 = arith.constant 0 : index
    %1 = vector.load %arg2[%c0_1, %c0_2] : memref<192x128xbf16, #tpu.memory_space<vmem>>, vector<192x128xbf16>
    %cst = arith.constant dense<0.000000e+00> : vector<8x128xf32>
    %2 = tpu.matmul %0, %1, %cst {dimension_numbers = #tpu.dot_dimension_numbers<[1], [0], [0], [1], [0, 0, 1, 1], [], []>} : vector<8x192xbf16>, vector<192x128xbf16>, vector<8x128xf32> -> vector<8x128xf32>
    %c0_3 = arith.constant 0 : index
    %c0_4 = arith.constant 0 : index
    %3 = vector.load %arg3[%c0_3, %c0_4] : memref<1x128xf32, #tpu.memory_space<vmem>>, vector<1x128xf32>
    %4 = vector.broadcast %3 : vector<1x128xf32> to vector<8x128xf32>
    %5 = arith.addf %2, %4 : vector<8x128xf32>
    %c0_5 = arith.constant 0 : index
    %c0_6 = arith.constant 0 : index
    %6 = vector.load %arg4[%c0_5, %c0_6] : memref<8x128xf32, #tpu.memory_space<vmem>>, vector<8x128xf32>
    tpu.vector_store %arg4[%c0_5, %c0_6], %5 {strides = array<i32>} : memref<8x128xf32, #tpu.memory_space<vmem>>, vector<8x128xf32>,
    return
  }
  func.func @transform_0(%arg0: i32) -> (i32, i32) {
    %c0_i32 = arith.constant 0 : i32
    %c0_i32_0 = arith.constant 0 : i32
    return %arg0, %c0_i32 : i32, i32
  }
  func.func @transform_1(%arg0: i32) -> (i32, i32) {
    %c0_i32 = arith.constant 0 : i32
    %c0_i32_0 = arith.constant 0 : i32
    %c0_i32_1 = arith.constant 0 : i32
    return %c0_i32, %c0_i32_0 : i32, i32
  }
  func.func @transform_2(%arg0: i32) -> (i32, i32) {
    %c0_i32 = arith.constant 0 : i32
    %c0_i32_0 = arith.constant 0 : i32
    %c0_i32_1 = arith.constant 0 : i32
    return %c0_i32, %c0_i32_0 : i32, i32
  }
  func.func @transform_3(%arg0: i32) -> (i32, i32) {
    %c0_i32 = arith.constant 0 : i32
    %c0_i32_0 = arith.constant 0 : i32
    return %arg0, %c0_i32 : i32, i32
  }
}

</mosaic_0001>

<llo_original>
// kernel: tpu_custom_call.1
$region0: #{tpu_custom_call.1}
  #allocation0 [shape = 'u32[]', space=smem, size = 0x4, offset = 0x4, fixed_abs, tag = 'smem constant byte address 0x4 - core index']
  #allocation1 [shape = 'u32[72,128]{1,0:T(1,128)}', space=vmem, size = 0x9000, scoped, tag = 'internal scratch']
  %s0 = inlined_call_operand.hbm [shape: bf16[8,192], index: 0, kind: input, shape index: {}]
  %s1 = inlined_call_operand.hbm [shape: bf16[192,128], index: 1, kind: input, shape index: {}]
  %s2 = inlined_call_operand.vmem [shape: f32[1,128], index: 2, kind: input, shape index: {}]
  %s3 = inlined_call_operand.hbm [shape: f32[8,128], index: 3, kind: output, shape index: {}]
  %s4 = sld [smem:[#allocation0]]
  $region30: #{tpu_custom_call.1} parent=0
    _
  %s6 = ssub.s32 1, %s4
  %s7 = scalar_select 0, %s6, %s4
  $region1: #{tpu_custom_call.1} parent=0
    #allocation2 [shape = 'u8[4096]{0}', space=vmem, size = 0x1000, scoped, tag = 'input window, operand 0, single buffered']
    #allocation3 [shape = 's32[1]{0}', space=sflag, size = 0x4, scoped, tag = 'scoped memory for tpu_custom_call.1']
    #allocation4 [shape = 's32[1]{0}', space=sflag, size = 0x4, scoped, tag = 'scoped memory for tpu_custom_call.1']
    #allocation5 [shape = 'u8[49152]{0}', space=vmem, size = 0xc000, scoped, tag = 'input window, operand 1, single buffered']
    #allocation6 [shape = 's32[1]{0}', space=sflag, size = 0x4, scoped, tag = 'scoped memory for tpu_custom_call.1']
    #allocation7 [shape = 'u8[4096]{0}', space=vmem, size = 0x1000, scoped, tag = 'output window, operand 0, single buffered']
    %8 = vsyncpa [#allocation3], 0
    %9 = vsyncpa [#allocation6], 0
    %10 = vsyncpa [#allocation4], 0
    // Predicated region
    $region2: #{tpu_custom_call.1} parent=1 // pred_check
      _
    $region3: #{tpu_custom_call.1} parent=1 // pred_check_branch
      %12 = sbr.rel (0) target = $region5
    $region4: #{tpu_custom_call.1} parent=1 // pred_region
      %14 = vsyncadd [#allocation3], 0
      %s16 = sshll.u32 %s0, 4
      %s17 = int_to_ptr.hbm [resolvable:$true] %s16
      %s18 = sshll.u32 [#allocation2], 4
      %s19 = int_to_ptr.vmem [resolvable:$true] %s18
      %21 = dma.hbm_to_vmem [thread:$0]  %s17, 128, %s19, [#allocation3]
    $region5: #{tpu_custom_call.1} parent=1 // pred_fallthru
      _
    // Predicated region
    $region6: #{tpu_custom_call.1} parent=1 // pred_check
      _
    $region7: #{tpu_custom_call.1} parent=1 // pred_check_branch
      %23 = sbr.rel (0) target = $region9
    $region8: #{tpu_custom_call.1} parent=1 // pred_region
      %25 = vsyncadd [#allocation6], 0
      %s26 = sshll.u32 %s1, 4
      %s27 = int_to_ptr.hbm [resolvable:$true] %s26
      %s28 = sshll.u32 [#allocation5], 4
      %s29 = int_to_ptr.vmem [resolvable:$true] %s28
      %34 = dma.hbm_to_vmem [thread:$0]  %s27, 1536, %s29, [#allocation6], 64, 64, 4
    $region9: #{tpu_custom_call.1} parent=1 // pred_fallthru
      _
    // Predicated region
    $region10: #{tpu_custom_call.1} parent=1 // pred_check
      _
    $region11: #{tpu_custom_call.1} parent=1 // pred_check_branch
      %36 = sbr.rel (0) target = $region13
    $region12: #{tpu_custom_call.1} parent=1 // pred_region
      _
    $region13: #{tpu_custom_call.1} parent=1 // pred_fallthru
      _
    // Predicated region
    $region14: #{tpu_custom_call.1} parent=1 // pred_check
      _
    $region15: #{tpu_custom_call.1} parent=1 // pred_check_branch
      %38 = sbr.rel (0) target = $region17
    $region16: #{tpu_custom_call.1} parent=1 // pred_region
      %40 = dma.done [#allocation3], 128
    $region17: #{tpu_custom_call.1} parent=1 // pred_fallthru
      _
    // Predicated region
    $region18: #{tpu_custom_call.1} parent=1 // pred_check
      _
    $region19: #{tpu_custom_call.1} parent=1 // pred_check_branch
      %42 = sbr.rel (0) target = $region21
    $region20: #{tpu_custom_call.1} parent=1 // pred_region
      %44 = dma.done [#allocation6], 1536
    $region21: #{tpu_custom_call.1} parent=1 // pred_fallthru
      _
    %v46 = vld [vmem:[#allocation2] sm:$0xff]
    %v47 = vld [vmem:[#allocation5] sm:$0xf]
    %v48 = vld [vmem:[#allocation5 + $0x4] sm:$0xf]
    %v49 = vld [vmem:[#allocation5 + $0x8] sm:$0xf]
    %v50 = vld [vmem:[#allocation5 + $0xc] sm:$0xf]
    %v51 = vld [vmem:[#allocation5 + $0x10] sm:$0xf]
    %v52 = vld [vmem:[#allocation5 + $0x14] sm:$0xf]
    %v53 = vld [vmem:[#allocation5 + $0x18] sm:$0xf]
    %v54 = vld [vmem:[#allocation5 + $0x1c] sm:$0xf]
    %v55 = vld [vmem:[#allocation5 + $0x20] sm:$0xf]
    %v56 = vld [vmem:[#allocation5 + $0x24] sm:$0xf]
    %v57 = vld [vmem:[#allocation5 + $0x28] sm:$0xf]
    %v58 = vld [vmem:[#allocation5 + $0x2c] sm:$0xf]
    %v59 = vld [vmem:[#allocation5 + $0x30] sm:$0xf]
    %v60 = vld [vmem:[#allocation5 + $0x34] sm:$0xf]
    %v61 = vld [vmem:[#allocation5 + $0x38] sm:$0xf]
    %v62 = vld [vmem:[#allocation5 + $0x3c] sm:$0xf]
    %v63 = vld [vmem:[#allocation5 + $0x40] sm:$0xf]
    %v64 = vld [vmem:[#allocation5 + $0x44] sm:$0xf]
    %v65 = vld [vmem:[#allocation5 + $0x48] sm:$0xf]
    %v66 = vld [vmem:[#allocation5 + $0x4c] sm:$0xf]
    %v67 = vld [vmem:[#allocation5 + $0x50] sm:$0xf]
    %v68 = vld [vmem:[#allocation5 + $0x54] sm:$0xf]
    %v69 = vld [vmem:[#allocation5 + $0x58] sm:$0xf]
    %v70 = vld [vmem:[#allocation5 + $0x5c] sm:$0xf]
    %v71 = vld [vmem:[%s2] sm:$0x1]
    %v73 = vperm.slane %v71, 0
    %v76 = vunpack.c.l.b16 %v46
    %v77 = vunpack.c.h.b16 %v46
    %v78 = vpack.c.b16 %v76, %v76
    %v79 = vpack.c.b16 %v77, %v77
    %v105 = vunpack.c.l.b16 %v47
    %v106 = vunpack.c.l.b16 %v48
    %v107 = vunpack.c.l.b16 %v49
    %v108 = vunpack.c.l.b16 %v50
    %v109 = vunpack.c.l.b16 %v51
    %v110 = vunpack.c.l.b16 %v52
    %v111 = vunpack.c.l.b16 %v53
    %v112 = vunpack.c.l.b16 %v54
    %v113 = vunpack.c.l.b16 %v55
    %v114 = vunpack.c.l.b16 %v56
    %v115 = vunpack.c.l.b16 %v57
    %v116 = vunpack.c.l.b16 %v58
    %v117 = vunpack.c.l.b16 %v59
    %v118 = vunpack.c.l.b16 %v60
    %v119 = vunpack.c.l.b16 %v61
    %v120 = vunpack.c.l.b16 %v62
    %v121 = vunpack.c.l.b16 %v63
    %v122 = vunpack.c.l.b16 %v64
    %v123 = vunpack.c.l.b16 %v65
    %v124 = vunpack.c.l.b16 %v66
    %v125 = vunpack.c.l.b16 %v67
    %v126 = vunpack.c.l.b16 %v68
    %v127 = vunpack.c.l.b16 %v69
    %v128 = vunpack.c.l.b16 %v70
    %v129 = vpack.c.b16 %v106, %v105
    %v130 = vpack.c.b16 %v108, %v107
    %v131 = vpack.c.b16 %v110, %v109
    %v132 = vpack.c.b16 %v112, %v111
    %v133 = vpack.c.b16 %v114, %v113
    %v134 = vpack.c.b16 %v116, %v115
    %v135 = vpack.c.b16 %v118, %v117
    %v136 = vpack.c.b16 %v120, %v119
    %v137 = vpack.c.b16 %v122, %v121
    %v138 = vpack.c.b16 %v124, %v123
    %v139 = vpack.c.b16 %v126, %v125
    %v140 = vpack.c.b16 %v128, %v127
    %vm153 = vcmask 523264
    %v155 = vsel %vm153, %v79, 0
    %157 = vmatpush.bf16.msra.mxu0 %v136
    %158 = vmatpush.bf16.msra.mxu0 %v135
    %159 = vmatpush.bf16.msra.mxu0 %v134
    %160 = vmatpush.bf16.msra.mxu0 %v133
    %161 = vmatpush.bf16.msra.mxu0 %v132
    %162 = vmatpush.bf16.msra.mxu0 %v131
    %163 = vmatpush.bf16.msra.mxu0 %v130
    %164 = vmatpush.bf16.msra.mxu0 %v129
    %165 = vmatmul.bf16.gmra.mxu0 %v78
    %v166 = vpop.f32.mrf.mxu0
    %v167 = vadd.f32 %v73, %v166
    %v168 = vpop.f32.mrf.mxu0
    %169 = vdwg.mxu0
    %170 = vmatpush.bf16.msra.mxu0 0
    %171 = vmatpush.bf16.msra.mxu0 0
    %172 = vmatpush.bf16.msra.mxu0 0
    %173 = vmatpush.bf16.msra.mxu0 0
    %174 = vmatpush.bf16.msra.mxu0 %v140
    %175 = vmatpush.bf16.msra.mxu0 %v139
    %176 = vmatpush.bf16.msra.mxu0 %v138
    %177 = vmatpush.bf16.msra.mxu0 %v137
    %178 = vmatmul.bf16.gmra.mxu0 %v155
    %v179 = vpop.f32.mrf.mxu0
    %v180 = vadd.f32 %v167, %v179
    %v181 = vpop.f32.mrf.mxu0
    %182 = vdwg.mxu0
    %183 = vst [vmem:[#allocation7] sm:$0xff] %v180
    // Predicated region
    $region22: #{tpu_custom_call.1} parent=1 // pred_check
      _
    $region23: #{tpu_custom_call.1} parent=1 // pred_check_branch
      %185 = sbr.rel (0) target = $region25
    $region24: #{tpu_custom_call.1} parent=1 // pred_region
      %187 = vsyncadd [#allocation4], 0
      %s189 = sshll.u32 [#allocation7], 4
      %s190 = int_to_ptr.vmem [resolvable:$true] %s189
      %s191 = sshll.u32 %s3, 4
      %s192 = int_to_ptr.hbm [resolvable:$true] %s191
      %194 = dma.vmem_to_hbm [thread:$0]  %s190, 128, %s192, [#allocation4]
    $region25: #{tpu_custom_call.1} parent=1 // pred_fallthru
      _
    // Predicated region
    $region26: #{tpu_custom_call.1} parent=1 // pred_check
      _
    $region27: #{tpu_custom_call.1} parent=1 // pred_check_branch
      %196 = sbr.rel (0) target = $region29
    $region28: #{tpu_custom_call.1} parent=1 // pred_region
      %198 = dma.done [#allocation4], 128
    $region29: #{tpu_custom_call.1} parent=1 // pred_fallthru
      _
    %199 = vsyncpa [#allocation3], 1
    %200 = vsyncpa [#allocation6], 1
    %201 = vsyncpa [#allocation4], 1

</llo_original>
